<compile_context>
chip_gen: v7x
topology: tpu7x:2x2x1
jax: 0.10.0
libtpu: 0.0.40
codegen_flags: <defaults>
</compile_context>

<pallas_src>
import functools

import jax
import jax.numpy as jnp
from jax.experimental import pallas as pl
from jax.experimental.pallas import tpu as pltpu


def _pignistic_kernel(x_ref, o_ref, *, num_class):
    # x_ref: (TB, num_class + 1) tile in VMEM; o_ref: (TB, num_class) tile.
    x = x_ref[...]
    omega = x[:, num_class:num_class + 1]              # (TB, 1) — omega mass column
    inv_c = 1.0 / float(num_class)                      # compile-time constant
    o_ref[...] = x[:, :num_class] + omega * inv_c       # broadcast add along classes


def dm_pignistic_forward(inputs, num_class, *, tb=None):
    """Pignistic probability: distribute omega mass evenly over the classes.

    Args:
      inputs: (B, num_class + 1) array; last column is the omega mass.
      num_class: number of classes.
      tb: optional batch tile size (multiple of 8, or defaults chosen here).

    Returns:
      (B, num_class) array of pignistic probabilities.
    """
    B, cp1 = inputs.shape
    assert cp1 == num_class + 1, "inputs last dim must be num_class + 1"

    if tb is None:
        if B <= 8:
            tb = B                       # full-dim block (always legal)
        else:
            tb = min(1024, (B // 8) * 8)  # multiple of 8, cheap VMEM footprint
    if tb != B and tb % 8 != 0:
        tb = max(8, (tb // 8) * 8)

    grid = (pl.cdiv(B, tb),)
    kernel = functools.partial(_pignistic_kernel, num_class=num_class)

    return pl.pallas_call(
        kernel,
        out_shape=jax.ShapeDtypeStruct((B, num_class), inputs.dtype),
        grid=grid,
        in_specs=[
            # Full class axis (small, equals array dim); batch axis tiled.
            pl.BlockSpec((tb, cp1), lambda i: (i, 0)),
        ],
        out_specs=pl.BlockSpec((tb, num_class), lambda i: (i, 0)),
        compiler_params=pltpu.CompilerParams(
            # Batch tiles are independent -> shard across TCs on v7x megacore.
            dimension_semantics=("parallel",),
        ),
    )(inputs)


if __name__ == "__main__":
    # Small shapes consistent with the module: batch=32, num_class=8.
    B, NUM_CLASS = 32, 8
    key = jax.random.PRNGKey(0)
    # Mass-like inputs: non-negative, rows roughly normalized (values don't
    # need to sum to 1 for the op itself, but keep them plausible).
    raw = jax.random.uniform(key, (B, NUM_CLASS + 1), dtype=jnp.float32)
    inputs = raw / jnp.sum(raw, axis=-1, keepdims=True)

    out = dm_pignistic_forward(inputs, NUM_CLASS, tb=8)  # grid=(4,) exercises tiling
    out = jax.block_until_ready(out)

    # Pure-JAX reference check (mirrors the PyTorch forward exactly).
    avg = inputs[:, -1:] / NUM_CLASS
    ref = (inputs + avg)[:, :-1]
    assert out.shape == (B, NUM_CLASS)
    assert jnp.allclose(out, ref, atol=1e-6, rtol=1e-6)

    print("KERNEL_OK")
</pallas_src>

<mosaic_0001>
module attributes {stable_mosaic.version = 11 : i64} {
  func.func @_pignistic_kernel(%arg0: i32, %arg1: memref<8x9xf32, #tpu.memory_space<vmem>>, %arg2: memref<8x8xf32, #tpu.memory_space<vmem>>) attributes {dimension_semantics = [#tpu.dimension_semantics<parallel>], iteration_bounds = array<i64: 4>, scalar_prefetch = 0 : i64, scratch_operands = 0 : i64, tpu.core_type = #tpu.core_type<tc>, window_params = [{transform_indices = @transform_0, window_bounds = array<i64: 8, 9>}, {transform_indices = @transform_1, window_bounds = array<i64: 8, 8>}]} {
    %c0 = arith.constant 0 : index
    %c0_0 = arith.constant 0 : index
    %0 = vector.load %arg1[%c0, %c0_0] : memref<8x9xf32, #tpu.memory_space<vmem>>, vector<8x9xf32>
    %1 = vector.extract_strided_slice %0 {offsets = [0, 8], sizes = [8, 1], strides = [1, 1]} : vector<8x9xf32> to vector<8x1xf32>
    %2 = vector.extract_strided_slice %0 {offsets = [0, 0], sizes = [8, 8], strides = [1, 1]} : vector<8x9xf32> to vector<8x8xf32>
    %cst = arith.constant 1.250000e-01 : f32
    %3 = vector.broadcast %cst : f32 to vector<8x1xf32>
    %4 = arith.mulf %1, %3 : vector<8x1xf32>
    %5 = vector.broadcast %4 : vector<8x1xf32> to vector<8x8xf32>
    %6 = arith.addf %2, %5 : vector<8x8xf32>
    %c0_1 = arith.constant 0 : index
    %c0_2 = arith.constant 0 : index
    %7 = vector.load %arg2[%c0_1, %c0_2] : memref<8x8xf32, #tpu.memory_space<vmem>>, vector<8x8xf32>
    tpu.vector_store %arg2[%c0_1, %c0_2], %6 {strides = array<i32>} : memref<8x8xf32, #tpu.memory_space<vmem>>, vector<8x8xf32>,
    return
  }
  func.func @transform_0(%arg0: i32) -> (i32, i32) {
    %c0_i32 = arith.constant 0 : i32
    %c0_i32_0 = arith.constant 0 : i32
    return %arg0, %c0_i32 : i32, i32
  }
  func.func @transform_1(%arg0: i32) -> (i32, i32) {
    %c0_i32 = arith.constant 0 : i32
    %c0_i32_0 = arith.constant 0 : i32
    return %arg0, %c0_i32 : i32, i32
  }
}

</mosaic_0001>

<llo_original>
// kernel: tpu_custom_call.1
$region0: #{tpu_custom_call.1}
  #allocation0 [shape = 'u32[]', space=smem, size = 0x4, offset = 0x4, fixed_abs, tag = 'smem constant byte address 0x4 - core index']
  #allocation1 [shape = 'u32[144,128]{1,0:T(1,128)}', space=vmem, size = 0x12000, scoped, tag = 'internal scratch']
  %s0 = inlined_call_operand.vmem [shape: f32[32,9], index: 0, kind: input, shape index: {}]
  %s1 = inlined_call_operand.vmem [shape: f32[32,8], index: 1, kind: output, shape index: {}]
  %s2 = sld [smem:[#allocation0]]
  $region37: #{tpu_custom_call.1} parent=0
    _
  %s4 = ssub.s32 1, %s2
  %s5 = scalar_select 0, %s4, %s2
  loop: start=0, step=1, limit=6
  $region2: #{tpu_custom_call.1} parent=0 // loop_pre_header
    _
  $region3: #{tpu_custom_call.1} parent=0 // loop_header
    %s7 = sphi 0, %s11
    %p8 = scmp.ge.s32.totalorder %s7, 6
    %s17 = sphi 0, %s19
    %s20 = sphi 0, %s17
    %s21 = sphi 0, %s20
    %s37 = sphi 0, %s21
    %s43 = sphi 0, %s45
    %s46 = sphi 0, %s43
    %s47 = sphi 0, %s46
    %s63 = sphi 0, %s47
  $region4: #{tpu_custom_call.1} parent=0 // loop_header_branch
    %10 = sbr.rel (%p8) target = $region8
  $region5: #{tpu_custom_call.1} parent=0 // loop_body
    %s12 = ssub.s32 %s7, 1
    %s13 = ssub.s32 %s7, 2
    %s14 = sadd.s32 %s7, 1
    %s15 = ssub.s32 %s7, %s14
    %p16 = scmp.eq.s32.totalorder %s15, 0
    %s18 = sadd.s32 %s17, 1
    %s19 = scalar_select %p16, %s17, %s18
    %p22 = pneg %p16
    %p23 = scmp.eq.s32.totalorder %s7, 3
    %p24 = por %p22, %p23
    %p25 = scmp.ne.s32.totalorder %s17, %s20
    %p26 = scmp.eq.s32.totalorder %s7, 0
    %p27 = por %p25, %p26
    %p28 = scmp.ne.s32.totalorder %s17, %s20
    %p29 = scmp.eq.s32.totalorder %s12, 3
    %p30 = por %p28, %p29
    %p31 = scmp.ne.s32.totalorder %s20, %s21
    %p32 = scmp.eq.s32.totalorder %s12, 0
    %p33 = por %p31, %p32
    %p34 = scmp.ne.s32.totalorder %s20, %s21
    %p35 = scmp.eq.s32.totalorder %s13, 3
    %p36 = por %p34, %p35
    %p38 = scmp.ne.s32.totalorder %s21, %s37
    %p39 = scmp.eq.s32.totalorder %s13, 0
    %p40 = por %p38, %p39
    %s41 = ssub.s32 %s7, %s14
    %p42 = scmp.eq.s32.totalorder %s41, 0
    %s44 = sadd.s32 %s43, 1
    %s45 = scalar_select %p42, %s43, %s44
    %p48 = pneg %p42
    %p49 = scmp.eq.s32.totalorder %s7, 3
    %p50 = por %p48, %p49
    %p51 = scmp.ne.s32.totalorder %s43, %s46
    %p52 = scmp.eq.s32.totalorder %s7, 0
    %p53 = por %p51, %p52
    %p54 = scmp.ne.s32.totalorder %s43, %s46
    %p55 = scmp.eq.s32.totalorder %s12, 3
    %p56 = por %p54, %p55
    %p57 = scmp.ne.s32.totalorder %s46, %s47
    %p58 = scmp.eq.s32.totalorder %s12, 0
    %p59 = por %p57, %p58
    %p60 = scmp.ne.s32.totalorder %s46, %s47
    %p61 = scmp.eq.s32.totalorder %s13, 3
    %p62 = por %p60, %p61
    %p64 = scmp.ne.s32.totalorder %s47, %s63
    %p65 = scmp.eq.s32.totalorder %s13, 0
    %p66 = por %p64, %p65
    %p67 = scmp.le.s32.totalorder 1, %s7
    %p68 = scmp.lt.s32.totalorder %s7, 5
    %p69 = pnand %p67, %p68
    %p70 = pneg %p69
    // Predicated region
    $region9: #{tpu_custom_call.1} parent=5 // pred_check
      _
    $region10: #{tpu_custom_call.1} parent=5 // pred_check_branch
      %72 = sbr.rel (%p69) target = $region12
    $region11: #{tpu_custom_call.1} parent=5 // pred_region
      %s73 = ssub.s32 %s7, 1
    $region12: #{tpu_custom_call.1} parent=5 // pred_fallthru
      _
    %p74 = scmp.lt.s32.totalorder %s7, 4
    // Predicated region
    $region13: #{tpu_custom_call.1} parent=5 // pred_check
      %p75 = pneg %p74
    $region14: #{tpu_custom_call.1} parent=5 // pred_check_branch
      %77 = sbr.rel (%p75) target = $region16
    $region15: #{tpu_custom_call.1} parent=5 // pred_region
      // Predicated region
      $region17: #{tpu_custom_call.1} parent=15 // pred_check
        %p78 = pneg %p27
      $region18: #{tpu_custom_call.1} parent=15 // pred_check_branch
        %80 = sbr.rel (%p78) target = $region20
      $region19: #{tpu_custom_call.1} parent=15 // pred_region
        %p81 = scmp.lt.s32.totalorder %s7, 3
        %s82 = scalar_select %p81, %s7, 3
        %s83 = smul.addr %s82, 8
        %s84 = scalar_lea.vmem %s0, %s83
      $region20: #{tpu_custom_call.1} parent=15 // pred_fallthru
        _
    $region16: #{tpu_custom_call.1} parent=5 // pred_fallthru
      _
    %p85 = scmp.le.s32.totalorder 1, %s7
    %p86 = scmp.lt.s32.totalorder %s7, 5
    %p87 = pnand %p85, %p86
    %p88 = pneg %p87
    // Predicated region
    $region21: #{tpu_custom_call.1} parent=5 // pred_check
      _
    $region22: #{tpu_custom_call.1} parent=5 // pred_check_branch
      %90 = sbr.rel (%p87) target = $region24
    $region23: #{tpu_custom_call.1} parent=5 // pred_region
      %s91 = ssub.s32 %s7, 1
      %p92 = scmp.lt.s32.totalorder %s12, 3
      %s93 = scalar_select %p92, %s12, 3
      %s94 = smul.addr %s93, 8
      %s95 = scalar_lea.vmem %s0, %s94
      %p96 = pneg %p33
      %p97 = pneg %p30
      %p98 = pneg %p59
      %p99 = pneg %p56
      %p100 = scmp.lt.s32.totalorder %s12, 3
      %s101 = scalar_select %p100, %s12, 3
      %s102 = smul.addr %s101, 8
      %s103 = scalar_lea.vmem %s1, %s102
      %p104 = scmp.lt.s32.totalorder %s12, 3
      %s105 = scalar_select %p104, %s12, 3
      %s106 = smul.addr %s105, 8
      %s107 = scalar_lea.vmem %s0, %s106
      %p108 = scmp.lt.s32.totalorder %s12, 3
      %s109 = scalar_select %p108, %s12, 3
      %s110 = smul.addr %s109, 8
      %s111 = scalar_lea.vmem %s1, %s110
      %v112 = vld [vmem:[%s107] sm:$0xff]
      %v113 = vmul.f32 %v112, 0.125
      %115 = vset.pattern.permute.xlu0 8
      %116 = vperm.xlu0 %115, %v113
      %v117 = vpop.permute.xlu0 %116
      %v119 = vadd.f32 %v112, %v117
      %vm120 = vcmask 64512
      %121 = vst.msk [vmem:[%s111] sm:$0xff] %vm120, %v119
      %p122 = scmp.lt.s32.totalorder %s12, 3
      %s123 = scalar_select %p122, %s12, 3
      %s124 = smul.addr %s123, 8
      %s125 = scalar_lea.vmem %s1, %s124
      // Predicated region
      $region25: #{tpu_custom_call.1} parent=23 // pred_check
        %p126 = pneg %p56
      $region26: #{tpu_custom_call.1} parent=23 // pred_check_branch
        %128 = sbr.rel (%p126) target = $region28
      $region27: #{tpu_custom_call.1} parent=23 // pred_region
        _
      $region28: #{tpu_custom_call.1} parent=23 // pred_fallthru
        _
    $region24: #{tpu_custom_call.1} parent=5 // pred_fallthru
      _
    %p129 = scmp.le.s32.totalorder 2, %s7
    // Predicated region
    $region29: #{tpu_custom_call.1} parent=5 // pred_check
      %p130 = pneg %p129
    $region30: #{tpu_custom_call.1} parent=5 // pred_check_branch
      %132 = sbr.rel (%p130) target = $region32
    $region31: #{tpu_custom_call.1} parent=5 // pred_region
      %s133 = ssub.s32 %s7, 2
      // Predicated region
      $region33: #{tpu_custom_call.1} parent=31 // pred_check
        %p134 = pneg %p62
      $region34: #{tpu_custom_call.1} parent=31 // pred_check_branch
        %136 = sbr.rel (%p134) target = $region36
      $region35: #{tpu_custom_call.1} parent=31 // pred_region
        %p137 = scmp.lt.s32.totalorder %s13, 3
        %s138 = scalar_select %p137, %s13, 3
        %s139 = smul.addr %s138, 8
        %s140 = scalar_lea.vmem %s1, %s139
      $region36: #{tpu_custom_call.1} parent=31 // pred_fallthru
        _
    $region32: #{tpu_custom_call.1} parent=5 // pred_fallthru
      _
  $region6: #{tpu_custom_call.1} parent=0 // loop_footer
    %s11 = sadd.s32 1, %s7
  $region7: #{tpu_custom_call.1} parent=0 // loop_footer_branch
    %6 = sbr.rel target = $region3
  $region8: #{tpu_custom_call.1} parent=0 // loop_exit
    _

</llo_original>
